<compile_context>
chip_gen: v6e
topology: v6e:2x2x1
jax: 0.10.0
libtpu: 0.0.40
codegen_flags: <defaults>
</compile_context>

<pallas_src>
import functools

import jax
import jax.numpy as jnp
from jax.experimental import pallas as pl
from jax.experimental.pallas import tpu as pltpu


_LANES = 128
_MAX_BLOCK_ROWS = 1024  # sweepable: 512 / 1024 / 2048 rows all fit default VMEM


def _loss_sums_kernel(a_ref, b_ref, acc_ref, acc2_ref, *, eps):
    """Accumulate per-core (1,8,128) slabs of d and d**2, d = log((a+eps)/(b+eps))."""
    i = pl.program_id(1)  # reduction axis within this core's shard

    @pl.when(i == 0)
    def _():
        acc_ref[...] = jnp.zeros_like(acc_ref)
        acc2_ref[...] = jnp.zeros_like(acc2_ref)

    a = a_ref[...].astype(jnp.float32)
    b = b_ref[...].astype(jnp.float32)
    # Single log (the EUP slot is the scarce unit): log(a+eps)-log(b+eps) == log((a+eps)/(b+eps)).
    d = jnp.log((a + eps) / (b + eps))
    d3 = d.reshape(-1, 8, _LANES)  # vreg-aligned (n_vregs, 8, 128) view
    # VPU-only accumulation into vreg-shaped slabs; no per-step XLU reduce,
    # no masked (1,1) partial stores in the inner loop.
    acc_ref[...] += jnp.sum(d3, axis=0, keepdims=True)
    acc2_ref[...] += jnp.sum(d3 * d3, axis=0, keepdims=True)


def _sublane_align(dtype):
    itemsize = jnp.dtype(dtype).itemsize
    return {4: 8, 2: 16, 1: 32}.get(itemsize, 8)


def scale_invar_loss(a, b, eps=5.0, lamda=0.5):
    """JAX/Pallas equivalent of scaleInvarLoss.forward(a, b, eps, lamda)."""
    assert a.shape == b.shape
    size = a.shape[0]  # d.size()[0] in the PyTorch module
    eps = float(eps)
    lamda = float(lamda)

    # Keep the native dtype (bf16 stays bf16 on the HBM->VMEM stream); cast in-register.
    a_flat = jnp.ravel(a)
    b_flat = jnp.ravel(b)
    n = a_flat.shape[0]

    align = max(_sublane_align(a_flat.dtype), _sublane_align(b_flat.dtype))
    rows_total = n // _LANES
    block_rows = min(_MAX_BLOCK_ROWS, (rows_total // align) * align)

    sum_d = jnp.float32(0.0)
    sum_d2 = jnp.float32(0.0)
    n_main = 0

    if block_rows > 0:
        num_blocks = rows_total // block_rows
        rows_main = num_blocks * block_rows
        n_main = rows_main * _LANES

        # Megacore (v7x): shard the reduction over a leading "parallel" axis with
        # per-core partial slabs; harmless (sequential) on single-TC chips.
        ncores = 2 if (num_blocks >= 2 and num_blocks % 2 == 0) else 1
        blocks_per_core = num_blocks // ncores

        a2d = a_flat[:n_main].reshape(rows_main, _LANES)
        b2d = b_flat[:n_main].reshape(rows_main, _LANES)

        kernel = functools.partial(_loss_sums_kernel, eps=eps)
        in_map = lambda c, i: (c * blocks_per_core + i, 0)
        out_map = lambda c, i: (c, 0, 0)

        acc, acc2 = pl.pallas_call(
            kernel,
            out_shape=(
                jax.ShapeDtypeStruct((ncores, 8, _LANES), jnp.float32),
                jax.ShapeDtypeStruct((ncores, 8, _LANES), jnp.float32),
            ),
            grid_spec=pltpu.PrefetchScalarGridSpec(
                num_scalar_prefetch=0,
                grid=(ncores, blocks_per_core),
                in_specs=[
                    pl.BlockSpec((block_rows, _LANES), in_map),
                    pl.BlockSpec((block_rows, _LANES), in_map),
                ],
                out_specs=[
                    pl.BlockSpec((1, 8, _LANES), out_map),
                    pl.BlockSpec((1, 8, _LANES), out_map),
                ],
            ),
            compiler_params=pltpu.CompilerParams(
                dimension_semantics=("parallel", "arbitrary"),
            ),
        )(a2d, b2d)

        sum_d = sum_d + jnp.sum(acc)
        sum_d2 = sum_d2 + jnp.sum(acc2)

    if n_main < n:
        # Tail (< one block) handled in plain JAX -- avoids materializing a padded
        # copy of the full tensors and keeps the kernel free of masking logic.
        ta = a_flat[n_main:].astype(jnp.float32)
        tb = b_flat[n_main:].astype(jnp.float32)
        td = jnp.log((ta + eps) / (tb + eps))
        sum_d = sum_d + jnp.sum(td)
        sum_d2 = sum_d2 + jnp.sum(td * td)

    size_f = jnp.float32(size)
    loss = sum_d2 / size_f - jnp.float32(lamda) * (sum_d ** 2) / (size_f ** 2)
    return loss


def _reference_loss(a, b, eps=5.0, lamda=0.5):
    log_a = jnp.log(a.astype(jnp.float32) + eps)
    log_b = jnp.log(b.astype(jnp.float32) + eps)
    d = log_a - log_b
    size = d.shape[0]
    return jnp.sum(d ** 2) / size - lamda * jnp.sum(d) ** 2 / size ** 2


if __name__ == "__main__":
    key = jax.random.PRNGKey(0)
    ka, kb = jax.random.split(key)
    # small, conv-like shapes: prediction and target, NCHW
    a = jax.random.uniform(ka, (2, 4, 16, 16), dtype=jnp.float32)
    b = jax.random.uniform(kb, (2, 4, 16, 16), dtype=jnp.float32)

    loss = scale_invar_loss(a, b)
    loss = jax.block_until_ready(loss)

    ref = _reference_loss(a, b)
    assert jnp.allclose(loss, ref, atol=1e-5, rtol=1e-5), (loss, ref)
    print("KERNEL_OK")
</pallas_src>

<mosaic_0001>
module attributes {stable_mosaic.version = 11 : i64} {
  func.func @_loss_sums_kernel(%arg0: i32, %arg1: i32, %arg2: memref<16x128xf32, #tpu.memory_space<vmem>>, %arg3: memref<16x128xf32, #tpu.memory_space<vmem>>, %arg4: memref<1x8x128xf32, #tpu.memory_space<vmem>>, %arg5: memref<1x8x128xf32, #tpu.memory_space<vmem>>) attributes {dimension_semantics = [#tpu.dimension_semantics<parallel>, #tpu.dimension_semantics<arbitrary>], iteration_bounds = array<i64: 1, 1>, scalar_prefetch = 0 : i64, scratch_operands = 0 : i64, tpu.core_type = #tpu.core_type<tc>, window_params = [{transform_indices = @transform_0, window_bounds = array<i64: 16, 128>}, {transform_indices = @transform_1, window_bounds = array<i64: 16, 128>}, {transform_indices = @transform_2, window_bounds = array<i64: 1, 8, 128>}, {transform_indices = @transform_3, window_bounds = array<i64: 1, 8, 128>}]} {
    %c0_i32 = arith.constant 0 : i32
    %0 = arith.cmpi eq, %arg1, %c0_i32 : i32
    %1 = arith.extui %0 : i1 to i32
    %c0_i32_0 = arith.constant 0 : i32
    %2 = arith.cmpi ne, %1, %c0_i32_0 : i32
    scf.if %2 {
      %cst_19 = arith.constant 0.000000e+00 : f32
      %23 = vector.broadcast %cst_19 : f32 to vector<1x8x128xf32>
      %c0_20 = arith.constant 0 : index
      %c0_21 = arith.constant 0 : index
      %c0_22 = arith.constant 0 : index
      %24 = vector.load %arg4[%c0_20, %c0_21, %c0_22] : memref<1x8x128xf32, #tpu.memory_space<vmem>>, vector<1x8x128xf32>
      tpu.vector_store %arg4[%c0_20, %c0_21, %c0_22], %23 {strides = array<i32>} : memref<1x8x128xf32, #tpu.memory_space<vmem>>, vector<1x8x128xf32>,
      %cst_23 = arith.constant 0.000000e+00 : f32
      %25 = vector.broadcast %cst_23 : f32 to vector<1x8x128xf32>
      %c0_24 = arith.constant 0 : index
      %c0_25 = arith.constant 0 : index
      %c0_26 = arith.constant 0 : index
      %26 = vector.load %arg5[%c0_24, %c0_25, %c0_26] : memref<1x8x128xf32, #tpu.memory_space<vmem>>, vector<1x8x128xf32>
      tpu.vector_store %arg5[%c0_24, %c0_25, %c0_26], %25 {strides = array<i32>} : memref<1x8x128xf32, #tpu.memory_space<vmem>>, vector<1x8x128xf32>,
    } else {
    }
    %c0 = arith.constant 0 : index
    %c0_1 = arith.constant 0 : index
    %3 = vector.load %arg2[%c0, %c0_1] : memref<16x128xf32, #tpu.memory_space<vmem>>, vector<16x128xf32>
    %c0_2 = arith.constant 0 : index
    %c0_3 = arith.constant 0 : index
    %4 = vector.load %arg3[%c0_2, %c0_3] : memref<16x128xf32, #tpu.memory_space<vmem>>, vector<16x128xf32>
    %cst = arith.constant 5.000000e+00 : f32
    %5 = vector.broadcast %cst : f32 to vector<16x128xf32>
    %6 = arith.addf %3, %5 : vector<16x128xf32>
    %cst_4 = arith.constant 5.000000e+00 : f32
    %7 = vector.broadcast %cst_4 : f32 to vector<16x128xf32>
    %8 = arith.addf %4, %7 : vector<16x128xf32>
    %9 = arith.divf %6, %8 : vector<16x128xf32>
    %10 = math.log %9 : vector<16x128xf32>
    %11 = vector.shape_cast %10 : vector<16x128xf32> to vector<2x8x128xf32>
    %c0_5 = arith.constant 0 : index
    %c0_6 = arith.constant 0 : index
    %c0_7 = arith.constant 0 : index
    %12 = vector.load %arg4[%c0_5, %c0_6, %c0_7] : memref<1x8x128xf32, #tpu.memory_space<vmem>>, vector<1x8x128xf32>
    %cst_8 = arith.constant dense<0.000000e+00> : vector<8x128xf32>
    %13 = vector.multi_reduction <add>, %11, %cst_8 [0] : vector<2x8x128xf32> to vector<8x128xf32>
    %14 = vector.shape_cast %13 : vector<8x128xf32> to vector<1x8x128xf32>
    %15 = arith.addf %12, %14 : vector<1x8x128xf32>
    %c0_9 = arith.constant 0 : index
    %c0_10 = arith.constant 0 : index
    %c0_11 = arith.constant 0 : index
    %16 = vector.load %arg4[%c0_9, %c0_10, %c0_11] : memref<1x8x128xf32, #tpu.memory_space<vmem>>, vector<1x8x128xf32>
    tpu.vector_store %arg4[%c0_9, %c0_10, %c0_11], %15 {strides = array<i32>} : memref<1x8x128xf32, #tpu.memory_space<vmem>>, vector<1x8x128xf32>,
    %c0_12 = arith.constant 0 : index
    %c0_13 = arith.constant 0 : index
    %c0_14 = arith.constant 0 : index
    %17 = vector.load %arg5[%c0_12, %c0_13, %c0_14] : memref<1x8x128xf32, #tpu.memory_space<vmem>>, vector<1x8x128xf32>
    %18 = arith.mulf %11, %11 : vector<2x8x128xf32>
    %cst_15 = arith.constant dense<0.000000e+00> : vector<8x128xf32>
    %19 = vector.multi_reduction <add>, %18, %cst_15 [0] : vector<2x8x128xf32> to vector<8x128xf32>
    %20 = vector.shape_cast %19 : vector<8x128xf32> to vector<1x8x128xf32>
    %21 = arith.addf %17, %20 : vector<1x8x128xf32>
    %c0_16 = arith.constant 0 : index
    %c0_17 = arith.constant 0 : index
    %c0_18 = arith.constant 0 : index
    %22 = vector.load %arg5[%c0_16, %c0_17, %c0_18] : memref<1x8x128xf32, #tpu.memory_space<vmem>>, vector<1x8x128xf32>
    tpu.vector_store %arg5[%c0_16, %c0_17, %c0_18], %21 {strides = array<i32>} : memref<1x8x128xf32, #tpu.memory_space<vmem>>, vector<1x8x128xf32>,
    return
  }
  func.func @transform_0(%arg0: i32, %arg1: i32) -> (i32, i32) {
    %c1_i32 = arith.constant 1 : i32
    %0 = arith.muli %arg0, %c1_i32 : i32
    %1 = arith.addi %0, %arg1 : i32
    %c0_i32 = arith.constant 0 : i32
    %c0_i32_0 = arith.constant 0 : i32
    return %1, %c0_i32 : i32, i32
  }
  func.func @transform_1(%arg0: i32, %arg1: i32) -> (i32, i32) {
    %c1_i32 = arith.constant 1 : i32
    %0 = arith.muli %arg0, %c1_i32 : i32
    %1 = arith.addi %0, %arg1 : i32
    %c0_i32 = arith.constant 0 : i32
    %c0_i32_0 = arith.constant 0 : i32
    return %1, %c0_i32 : i32, i32
  }
  func.func @transform_2(%arg0: i32, %arg1: i32) -> (i32, i32, i32) {
    %c0_i32 = arith.constant 0 : i32
    %c0_i32_0 = arith.constant 0 : i32
    %c0_i32_1 = arith.constant 0 : i32
    return %arg0, %c0_i32, %c0_i32_0 : i32, i32, i32
  }
  func.func @transform_3(%arg0: i32, %arg1: i32) -> (i32, i32, i32) {
    %c0_i32 = arith.constant 0 : i32
    %c0_i32_0 = arith.constant 0 : i32
    %c0_i32_1 = arith.constant 0 : i32
    return %arg0, %c0_i32, %c0_i32_0 : i32, i32, i32
  }
}

</mosaic_0001>

<llo_original>
// kernel: tpu_custom_call.1
$region0: #{tpu_custom_call.1}
  #allocation0 [shape = 'u32[]', space=smem, size = 0x4, offset = 0x4, fixed_abs, tag = 'smem constant byte address 0x4 - core index']
  #allocation1 [shape = 'u32[144,128]{1,0:T(1,128)}', space=vmem, size = 0x12000, scoped, tag = 'internal scratch']
  %s0 = inlined_call_operand.hbm [shape: f32[16,128], index: 0, kind: input, shape index: {}]
  %s1 = inlined_call_operand.hbm [shape: f32[16,128], index: 1, kind: input, shape index: {}]
  %s2 = inlined_call_operand.hbm [shape: f32[1,8,128], index: 2, kind: output, shape index: {0}]
  %s3 = inlined_call_operand.hbm [shape: f32[1,8,128], index: 3, kind: output, shape index: {1}]
  %4 = xla_tuple %s2, %s3
  %s5 = sld [smem:[#allocation0]]
  $region38: #{tpu_custom_call.1} parent=0
    _
  %s7 = ssub.s32 1, %s5
  %s8 = scalar_select 0, %s7, %s5
  $region1: #{tpu_custom_call.1} parent=0
    #allocation2 [shape = 'u8[8192]{0}', space=vmem, size = 0x2000, scoped, tag = 'input window, operand 0, single buffered']
    #allocation3 [shape = 's32[1]{0}', space=sflag, size = 0x4, scoped, tag = 'scoped memory for tpu_custom_call.1']
    #allocation4 [shape = 's32[1]{0}', space=sflag, size = 0x4, scoped, tag = 'scoped memory for tpu_custom_call.1']
    #allocation5 [shape = 'u8[8192]{0}', space=vmem, size = 0x2000, scoped, tag = 'input window, operand 1, single buffered']
    #allocation6 [shape = 's32[1]{0}', space=sflag, size = 0x4, scoped, tag = 'scoped memory for tpu_custom_call.1']
    #allocation7 [shape = 'u8[4096]{0}', space=vmem, size = 0x1000, scoped, tag = 'output window, operand 0, single buffered']
    #allocation8 [shape = 'u8[4096]{0}', space=vmem, size = 0x1000, scoped, tag = 'output window, operand 1, single buffered']
    #allocation9 [shape = 's32[1]{0}', space=sflag, size = 0x4, scoped, tag = 'scoped memory for tpu_custom_call.1']
    %9 = vsyncpa [#allocation3], 0
    %10 = vsyncpa [#allocation6], 0
    %11 = vsyncpa [#allocation4], 0
    %12 = vsyncpa [#allocation9], 0
    // Predicated region
    $region2: #{tpu_custom_call.1} parent=1 // pred_check
      _
    $region3: #{tpu_custom_call.1} parent=1 // pred_check_branch
      %14 = sbr.rel (0) target = $region5
    $region4: #{tpu_custom_call.1} parent=1 // pred_region
      %s15 = sadd.s32 0, 0
      %s16 = smul.u32 2, %s15
      %s18 = ssub.s32 256, 256
      %19 = vsyncadd [#allocation3], %s18
      %s20 = smul.addr %s16, 128
      %s21 = scalar_lea.hbm %s0, %s20
      %s22 = sshll.u32 [#allocation2], 4
      %s23 = int_to_ptr.vmem [resolvable:$true] %s22
      %28 = dma.hbm_to_vmem [thread:$0]  %s21, 256, %s23, [#allocation3], 128, 128, 8
    $region5: #{tpu_custom_call.1} parent=1 // pred_fallthru
      _
    // Predicated region
    $region6: #{tpu_custom_call.1} parent=1 // pred_check
      _
    $region7: #{tpu_custom_call.1} parent=1 // pred_check_branch
      %30 = sbr.rel (0) target = $region9
    $region8: #{tpu_custom_call.1} parent=1 // pred_region
      %s31 = sadd.s32 0, 0
      %s32 = smul.u32 2, %s31
      %s34 = ssub.s32 256, 256
      %35 = vsyncadd [#allocation6], %s34
      %s36 = smul.addr %s32, 128
      %s37 = scalar_lea.hbm %s1, %s36
      %s38 = sshll.u32 [#allocation5], 4
      %s39 = int_to_ptr.vmem [resolvable:$true] %s38
      %44 = dma.hbm_to_vmem [thread:$0]  %s37, 256, %s39, [#allocation6], 128, 128, 8
    $region9: #{tpu_custom_call.1} parent=1 // pred_fallthru
      _
    // Predicated region
    $region10: #{tpu_custom_call.1} parent=1 // pred_check
      _
    $region11: #{tpu_custom_call.1} parent=1 // pred_check_branch
      %46 = sbr.rel (0) target = $region13
    $region12: #{tpu_custom_call.1} parent=1 // pred_region
      %47 = dma.done [#allocation3], 256
    $region13: #{tpu_custom_call.1} parent=1 // pred_fallthru
      _
    // Predicated region
    $region14: #{tpu_custom_call.1} parent=1 // pred_check
      _
    $region15: #{tpu_custom_call.1} parent=1 // pred_check_branch
      %49 = sbr.rel (0) target = $region17
    $region16: #{tpu_custom_call.1} parent=1 // pred_region
      %50 = dma.done [#allocation6], 256
    $region17: #{tpu_custom_call.1} parent=1 // pred_fallthru
      _
    %s51 = sadd.s32 0, 0
    %s52 = smul.u32 2, %s51
    %s53 = sadd.s32 0, 0
    %s54 = smul.u32 2, %s53
    %p55 = scmp.eq.s32.totalorder 0, 0
    // Predicated region
    $region18: #{tpu_custom_call.1} parent=1 // pred_check
      %p56 = pneg %p55
    $region19: #{tpu_custom_call.1} parent=1 // pred_check_branch
      %58 = sbr.rel (%p56) target = $region21
    $region20: #{tpu_custom_call.1} parent=1 // pred_region
      %59 = vst [vmem:[#allocation7] sm:$0xff] 0.0
      %60 = vst [vmem:[#allocation8] sm:$0xff] 0.0
    $region21: #{tpu_custom_call.1} parent=1 // pred_fallthru
      _
    %v61 = vld [vmem:[#allocation2] sm:$0xff]
    %v62 = vld [vmem:[#allocation2 + $0x8] sm:$0xff]
    %v63 = vld [vmem:[#allocation5] sm:$0xff]
    %v64 = vld [vmem:[#allocation5 + $0x8] sm:$0xff]
    %v65 = vadd.f32 %v61, 5.0
    %v66 = vadd.f32 %v62, 5.0
    %v67 = vadd.f32 %v63, 5.0
    %v68 = vadd.f32 %v64, 5.0
    %v69 = vrcp.pop %v67
    %v70 = vmul.f32 %v65, %v69
    %v71 = vrcp.pop %v68
    %v72 = vmul.f32 %v66, %v71
    %v73 = vlog2.pop %v70
    %v74 = vmul.f32 %v73, 0.6931472
    %v75 = vlog2.pop %v72
    %v76 = vmul.f32 %v75, 0.6931472
    %v77 = vld [vmem:[#allocation7] sm:$0xff]
    %v78 = vadd.f32 %v74, %v76
    %v79 = vadd.f32 %v77, %v78
    %80 = vst [vmem:[#allocation7] sm:$0xff] %v79
    %v81 = vld [vmem:[#allocation8] sm:$0xff]
    %v82 = vmul.f32 %v74, %v74
    %v83 = vmul.f32 %v76, %v76
    %v84 = vadd.f32 %v82, %v83
    %v85 = vadd.f32 %v81, %v84
    %86 = vst [vmem:[#allocation8] sm:$0xff] %v85
    // Predicated region
    $region22: #{tpu_custom_call.1} parent=1 // pred_check
      _
    $region23: #{tpu_custom_call.1} parent=1 // pred_check_branch
      %88 = sbr.rel (0) target = $region25
    $region24: #{tpu_custom_call.1} parent=1 // pred_region
      %s90 = ssub.s32 128, 128
      %91 = vsyncadd [#allocation4], %s90
      %s93 = sshll.u32 [#allocation7], 4
      %s94 = int_to_ptr.vmem [resolvable:$true] %s93
      %96 = dma.vmem_to_hbm [thread:$0]  %s94, 128, %s2, [#allocation4]
    $region25: #{tpu_custom_call.1} parent=1 // pred_fallthru
      _
    // Predicated region
    $region26: #{tpu_custom_call.1} parent=1 // pred_check
      _
    $region27: #{tpu_custom_call.1} parent=1 // pred_check_branch
      %98 = sbr.rel (0) target = $region29
    $region28: #{tpu_custom_call.1} parent=1 // pred_region
      %s100 = ssub.s32 128, 128
      %101 = vsyncadd [#allocation9], %s100
      %s103 = sshll.u32 [#allocation8], 4
      %s104 = int_to_ptr.vmem [resolvable:$true] %s103
      %106 = dma.vmem_to_hbm [thread:$0]  %s104, 128, %s3, [#allocation9]
    $region29: #{tpu_custom_call.1} parent=1 // pred_fallthru
      _
    // Predicated region
    $region30: #{tpu_custom_call.1} parent=1 // pred_check
      _
    $region31: #{tpu_custom_call.1} parent=1 // pred_check_branch
      %108 = sbr.rel (0) target = $region33
    $region32: #{tpu_custom_call.1} parent=1 // pred_region
      %109 = dma.done [#allocation4], 128
    $region33: #{tpu_custom_call.1} parent=1 // pred_fallthru
      _
    // Predicated region
    $region34: #{tpu_custom_call.1} parent=1 // pred_check
      _
    $region35: #{tpu_custom_call.1} parent=1 // pred_check_branch
      %111 = sbr.rel (0) target = $region37
    $region36: #{tpu_custom_call.1} parent=1 // pred_region
      %112 = dma.done [#allocation9], 128
    $region37: #{tpu_custom_call.1} parent=1 // pred_fallthru
      _
    %113 = vsyncpa [#allocation3], 1
    %114 = vsyncpa [#allocation6], 1
    %115 = vsyncpa [#allocation4], 1
    %116 = vsyncpa [#allocation9], 1

</llo_original>
